<compile_context>
chip_gen: v5e
topology: v5e:2x2
jax: 0.10.0
libtpu: 0.0.40
codegen_flags: <defaults>
</compile_context>

<pallas_src>
import functools

import jax
import jax.numpy as jnp
from jax.experimental import pallas as pl
from jax.experimental.pallas import tpu as pltpu


def _label_smoothing_kernel(x_ref, o_ref, *, confidence, bias):
    # Elementwise affine; computed in the native dtype (mem-bound op).
    o_ref[...] = (confidence * x_ref[...] + bias).astype(o_ref.dtype)


def _vmem_capacity_bytes():
    """Physical VMEM per TensorCore, with conservative fallbacks."""
    try:
        cap = getattr(pltpu.get_tpu_info(), "vmem_capacity_bytes", None)
        if cap:
            return int(cap)
    except Exception:
        pass
    try:
        kind = jax.devices()[0].device_kind.lower()
    except Exception:
        kind = ""
    if "v2" in kind or "v3" in kind:
        return 16 * 1024 * 1024
    if "v4" in kind or "v5" in kind or "v6" in kind:
        return 128 * 1024 * 1024
    return 64 * 1024 * 1024  # v7x and unknown parts: be conservative.


def _pick_row_tile(rows, max_rows_per_tile):
    """Rows per tile.

    Multiple of 8 (or the full `rows`), preferring a divisor of `rows` so the
    tail grid step stays an unmasked full tile, and capped so the grid has at
    least 4 steps when there is enough work (2 TensorCores x 2 steps on v7x).
    """
    if rows >= 32:
        max_rows_per_tile = min(max_rows_per_tile, rows // 4)
    if max_rows_per_tile >= rows:
        return rows
    base = max(8, (max_rows_per_tile // 8) * 8)
    for tm in range(base, 7, -8):
        if rows % tm == 0:
            return tm
    return base


def label_smoothing(x, n_labels, smoothing=0.0, *, donate_x=False,
                    _target_tile_bytes=None):
    """Pallas implementation of LabelSmoothing.forward.

    Args:
      x: [batch_size, seq_len, n_labels] floating-point array.
      n_labels: int, must equal x.shape[-1].
      smoothing: float smoothing factor.
      donate_x: alias the input HBM buffer as the output (caller must not
        reuse x afterwards).  Saves a multi-GiB allocation for large vocabs.
      _target_tile_bytes: test-only override of the per-buffer tile budget.

    Returns:
      [batch_size, seq_len, n_labels] array, same dtype as x.
    """
    assert x.ndim == 3, "expected [batch, seq, n_labels]"
    B, S, L = x.shape
    assert n_labels == L, "n_labels must match x.shape[-1]"
    assert jnp.issubdtype(x.dtype, jnp.floating), "expected floating logits"

    confidence = 1.0 - smoothing
    bias = smoothing / n_labels

    itemsize = jnp.dtype(x.dtype).itemsize
    n = B * S * L

    vmem_cap = _vmem_capacity_bytes()
    vmem_limit = min((vmem_cap * 3) // 4, 96 * 1024 * 1024)
    target_tile_bytes = _target_tile_bytes or max(1 << 20, vmem_limit // 6)

    kernel = functools.partial(
        _label_smoothing_kernel, confidence=confidence, bias=bias)
    aliases = {0: 0} if donate_x else {}

    # ---- choose a lane-dense 2D view when the element count allows it ------
    cols = None
    if n % 128 == 0:
        for c in (1024, 512, 256, 128):
            if n % c == 0:
                cols = c
                break
    elif L >= 128:
        cols = L  # full last dim: always a legal block layout

    if cols is not None:
        rows = n // cols
        x2d = x.reshape(rows, cols)  # contiguous reshape: free in XLA

        if 8 * cols * itemsize <= target_tile_bytes:
            # Row-grid only: tile covers the full (lane-dense) width.
            max_rows = max(8, target_tile_bytes // (cols * itemsize))
            tm = _pick_row_tile(rows, max_rows)
            grid = (pl.cdiv(rows, tm),)
            in_spec = pl.BlockSpec((tm, cols), lambda i: (i, 0))
            out_spec = pl.BlockSpec((tm, cols), lambda i: (i, 0))
            semantics = ("parallel",)
        else:
            # Huge last dim (big vocab): add a 128-multiple column axis so the
            # live buffers never exceed the VMEM budget.
            tn = max(128, (target_tile_bytes // (8 * itemsize)) // 128 * 128)
            tn = min(tn, (cols // 128) * 128)
            max_rows = max(8, target_tile_bytes // (tn * itemsize))
            tm = _pick_row_tile(rows, max_rows)
            grid = (pl.cdiv(rows, tm), pl.cdiv(cols, tn))
            in_spec = pl.BlockSpec((tm, tn), lambda i, j: (i, j))
            out_spec = pl.BlockSpec((tm, tn), lambda i, j: (i, j))
            semantics = ("parallel", "parallel")

        out2d = pl.pallas_call(
            kernel,
            out_shape=jax.ShapeDtypeStruct((rows, cols), x.dtype),
            grid_spec=pltpu.PrefetchScalarGridSpec(
                num_scalar_prefetch=0,
                grid=grid,
                in_specs=[in_spec],
                out_specs=out_spec),
            compiler_params=pltpu.CompilerParams(
                dimension_semantics=semantics,
                vmem_limit_bytes=vmem_limit),
            input_output_aliases=aliases,
        )(x2d)
        return out2d.reshape(B, S, L)

    # ---- lane-sparse fallback (n % 128 != 0 and L < 128): flatten to 1D ----
    # 1024-element blocks = full (8 sublane x 128 lane) vregs; only the final
    # tail block is masked.
    x1d = x.reshape(n)
    blk = max(1024, (target_tile_bytes // itemsize) // 1024 * 1024)
    if n >= 4 * 1024:
        blk = min(blk, max(1024, (n // 4) // 1024 * 1024))  # >= 4 grid steps
    if blk >= n:
        blk = n  # single full-extent block: always layout-legal
    out1d = pl.pallas_call(
        kernel,
        out_shape=jax.ShapeDtypeStruct((n,), x.dtype),
        grid_spec=pltpu.PrefetchScalarGridSpec(
            num_scalar_prefetch=0,
            grid=(pl.cdiv(n, blk),),
            in_specs=[pl.BlockSpec((blk,), lambda i: (i,))],
            out_specs=pl.BlockSpec((blk,), lambda i: (i,))),
        compiler_params=pltpu.CompilerParams(
            dimension_semantics=("parallel",),
            vmem_limit_bytes=vmem_limit),
        input_output_aliases=aliases,
    )(x1d)
    return out1d.reshape(B, S, L)


if __name__ == "__main__":
    smoothing = 0.1
    key = jax.random.PRNGKey(0)

    cases = [
        ((2, 8, 32), jnp.float32),    # lane-dense 2D path (n % 128 == 0)
        ((2, 8, 160), jnp.bfloat16),  # lane-dense 2D path, bf16
        ((3, 7, 100), jnp.float32),   # 1D fallback (n % 128 != 0, L < 128)
        ((5, 7, 200), jnp.float32),   # full-last-dim path (L >= 128)
    ]
    for idx, (shape, dtype) in enumerate(cases):
        key, sub = jax.random.split(key)
        L = shape[-1]
        x = jax.random.normal(sub, shape, dtype=jnp.float32).astype(dtype)
        out = jax.block_until_ready(
            label_smoothing(x, n_labels=L, smoothing=smoothing))
        ref = ((1.0 - smoothing) * x.astype(jnp.float32)
               + smoothing / L).astype(dtype)
        assert out.shape == shape and out.dtype == dtype, f"case {idx} meta"
        tol = 1e-6 if dtype == jnp.float32 else 2e-2
        assert jnp.allclose(out.astype(jnp.float32), ref.astype(jnp.float32),
                            atol=tol, rtol=tol), f"case {idx} mismatch"

    # Exercise the huge-vocab column-split guard with a tiny tile budget.
    key, sub = jax.random.split(key)
    x = jax.random.normal(sub, (2, 3, 300), dtype=jnp.float32)
    out = jax.block_until_ready(
        label_smoothing(x, n_labels=300, smoothing=smoothing,
                        _target_tile_bytes=4096))
    ref = (1.0 - smoothing) * x + smoothing / 300
    assert jnp.allclose(out, ref, atol=1e-6, rtol=1e-6), "column-split mismatch"

    print("KERNEL_OK")
</pallas_src>

<mosaic_0001>
module attributes {stable_mosaic.version = 11 : i64} {
  func.func @_label_smoothing_kernel(%arg0: i32, %arg1: memref<1x512xf32, #tpu.memory_space<vmem>>, %arg2: memref<1x512xf32, #tpu.memory_space<vmem>>) attributes {dimension_semantics = [#tpu.dimension_semantics<parallel>], iteration_bounds = array<i64: 1>, scalar_prefetch = 0 : i64, scratch_operands = 0 : i64, tpu.core_type = #tpu.core_type<tc>, window_params = [{transform_indices = @transform_0, window_bounds = array<i64: 1, 512>}, {transform_indices = @transform_1, window_bounds = array<i64: 1, 512>}]} {
    %c0 = arith.constant 0 : index
    %c0_0 = arith.constant 0 : index
    %0 = vector.load %arg1[%c0, %c0_0] : memref<1x512xf32, #tpu.memory_space<vmem>>, vector<1x512xf32>
    %cst = arith.constant 0.899999976 : f32
    %1 = vector.broadcast %cst : f32 to vector<1x512xf32>
    %2 = arith.mulf %1, %0 : vector<1x512xf32>
    %cst_1 = arith.constant 3.125000e-03 : f32
    %3 = vector.broadcast %cst_1 : f32 to vector<1x512xf32>
    %4 = arith.addf %2, %3 : vector<1x512xf32>
    %c0_2 = arith.constant 0 : index
    %c0_3 = arith.constant 0 : index
    %5 = vector.load %arg2[%c0_2, %c0_3] : memref<1x512xf32, #tpu.memory_space<vmem>>, vector<1x512xf32>
    tpu.vector_store %arg2[%c0_2, %c0_3], %4 {strides = array<i32>} : memref<1x512xf32, #tpu.memory_space<vmem>>, vector<1x512xf32>,
    return
  }
  func.func @transform_0(%arg0: i32) -> (i32, i32) {
    %c0_i32 = arith.constant 0 : i32
    %c0_i32_0 = arith.constant 0 : i32
    return %arg0, %c0_i32 : i32, i32
  }
  func.func @transform_1(%arg0: i32) -> (i32, i32) {
    %c0_i32 = arith.constant 0 : i32
    %c0_i32_0 = arith.constant 0 : i32
    return %arg0, %c0_i32 : i32, i32
  }
}

</mosaic_0001>

<llo_original>
// kernel: tpu_custom_call.1
$region0: #{tpu_custom_call.1}
  #allocation0 [shape = 'u32[]', space=smem, size = 0x4, offset = 0x4, fixed_abs, tag = 'smem constant byte address 0x4 - core index']
  #allocation1 [shape = 'u32[72,128]{1,0:T(1,128)}', space=vmem, size = 0x9000, scoped, tag = 'internal scratch']
  %s0 = inlined_call_operand.hbm [shape: f32[1,512], index: 0, kind: input, shape index: {}]
  %s1 = inlined_call_operand.hbm [shape: f32[1,512], index: 1, kind: output, shape index: {}]
  %s2 = sld [smem:[#allocation0]]
  $region18: #{tpu_custom_call.1} parent=0
    _
  %s4 = ssub.s32 1, %s2
  %s5 = scalar_select 0, %s4, %s2
  $region1: #{tpu_custom_call.1} parent=0
    #allocation2 [shape = 'u8[2048]{0}', space=vmem, size = 0x800, scoped, tag = 'input window, operand 0, single buffered']
    #allocation3 [shape = 's32[1]{0}', space=sflag, size = 0x4, scoped, tag = 'scoped memory for tpu_custom_call.1']
    #allocation4 [shape = 's32[1]{0}', space=sflag, size = 0x4, scoped, tag = 'scoped memory for tpu_custom_call.1']
    #allocation5 [shape = 'u8[2048]{0}', space=vmem, size = 0x800, scoped, tag = 'output window, operand 0, single buffered']
    %6 = vsyncpa [#allocation3], 0
    %7 = vsyncpa [#allocation4], 0
    // Predicated region
    $region2: #{tpu_custom_call.1} parent=1 // pred_check
      _
    $region3: #{tpu_custom_call.1} parent=1 // pred_check_branch
      %9 = sbr.rel (0) target = $region5
    $region4: #{tpu_custom_call.1} parent=1 // pred_region
      %11 = vsyncadd [#allocation3], 0
      %s13 = sshll.u32 %s0, 4
      %s14 = int_to_ptr.hbm [resolvable:$true] %s13
      %s15 = sshll.u32 [#allocation2], 4
      %s16 = int_to_ptr.vmem [resolvable:$true] %s15
      %18 = dma.hbm_to_vmem [thread:$0]  %s14, 64, %s16, [#allocation3]
    $region5: #{tpu_custom_call.1} parent=1 // pred_fallthru
      _
    // Predicated region
    $region6: #{tpu_custom_call.1} parent=1 // pred_check
      _
    $region7: #{tpu_custom_call.1} parent=1 // pred_check_branch
      %20 = sbr.rel (0) target = $region9
    $region8: #{tpu_custom_call.1} parent=1 // pred_region
      %22 = dma.done [#allocation3], 64
    $region9: #{tpu_custom_call.1} parent=1 // pred_fallthru
      _
    %v23 = vld [vmem:[#allocation2] sm:$0xf]
    %v24 = vmul.f32 %v23, 0.9
    %v25 = vadd.f32 %v24, 0.003125
    %v26 = vlaneseq
    %vm27 = vcmp.ge.s32.totalorder %v26, 0
    %vm28 = vcmp.lt.s32.totalorder %v26, 512
    %vm29 = vmand %vm27, %vm28
    %30 = vst.msk [vmem:[#allocation5] sm:$0xf] %vm29, %v25
    // Predicated region
    $region10: #{tpu_custom_call.1} parent=1 // pred_check
      _
    $region11: #{tpu_custom_call.1} parent=1 // pred_check_branch
      %32 = sbr.rel (0) target = $region13
    $region12: #{tpu_custom_call.1} parent=1 // pred_region
      %34 = vsyncadd [#allocation4], 0
      %s36 = sshll.u32 [#allocation5], 4
      %s37 = int_to_ptr.vmem [resolvable:$true] %s36
      %s38 = sshll.u32 %s1, 4
      %s39 = int_to_ptr.hbm [resolvable:$true] %s38
      %41 = dma.vmem_to_hbm [thread:$0]  %s37, 64, %s39, [#allocation4]
    $region13: #{tpu_custom_call.1} parent=1 // pred_fallthru
      _
    // Predicated region
    $region14: #{tpu_custom_call.1} parent=1 // pred_check
      _
    $region15: #{tpu_custom_call.1} parent=1 // pred_check_branch
      %43 = sbr.rel (0) target = $region17
    $region16: #{tpu_custom_call.1} parent=1 // pred_region
      %45 = dma.done [#allocation4], 64
    $region17: #{tpu_custom_call.1} parent=1 // pred_fallthru
      _
    %46 = vsyncpa [#allocation3], 1
    %47 = vsyncpa [#allocation4], 1

</llo_original>
